<compile_context>
chip_gen: v6e
topology: v6e:2x2x1
jax: 0.10.0
libtpu: 0.0.40
codegen_flags: <defaults>
</compile_context>

<pallas_src>
import functools

import jax
import jax.numpy as jnp
from jax.experimental import pallas as pl
from jax.experimental.pallas import tpu as pltpu

EPS = 1e-5  # torch.nn.LayerNorm default


# --------------------------------------------------------------------------
# Helpers
# --------------------------------------------------------------------------
def _vmem_limit_bytes():
    """~75% of physical VMEM, capped at 100 MiB (v5e/v6e ~96 MiB, v7x ~48 MiB)."""
    cap = 64 * 1024 * 1024
    try:
        info = pltpu.get_tpu_info()
        cap = int(getattr(info, "vmem_capacity_bytes", cap))
    except Exception:
        pass
    return int(min(cap * 3 // 4, 100 * 1024 * 1024))


def _invariant_spec(shape):
    """BlockSpec for a grid-invariant operand (constant index_map).

    Single-buffered via pipeline_mode=pl.Buffered(1) so resident weights / LN
    params don't pay the 2x double-buffer VMEM tax; falls back to a plain spec
    if the kwarg is unavailable in this JAX version.
    """
    index_map = lambda *_: (0,) * len(shape)
    try:
        return pl.BlockSpec(shape, index_map, pipeline_mode=pl.Buffered(1))
    except Exception:
        return pl.BlockSpec(shape, index_map)


def _layer_norm(z, gamma, beta):
    """Two-pass LayerNorm over the last axis (matches torch.nn.LayerNorm)."""
    mu = jnp.mean(z, axis=-1, keepdims=True)
    zc = z - mu
    var = jnp.mean(zc * zc, axis=-1, keepdims=True)
    return zc * jax.lax.rsqrt(var + EPS) * gamma + beta


def _pick_t_block(T, time_block):
    """Largest valid time block <= time_block (second-minor layout rules)."""
    if T <= time_block:
        return T                      # full extent is always layout-legal
    for step in (16, 8):              # prefer 16-multiples (bf16 sublane packing)
        best = None
        for d in range(step, time_block + 1, step):
            if T % d == 0:
                best = d
        if best is not None:
            return best
    return T                          # fallback: whole sequence in one block


# --------------------------------------------------------------------------
# Hoisted sequence-level x projection:  xg = LN_g(x @ W + b_W)  for all gates.
# --------------------------------------------------------------------------
def _xproj_kernel(x_ref, w_ref, bw_ref, gw_ref, bbw_ref, out_ref, *, hidden_dim):
    H = hidden_dim
    w = w_ref[...]
    xp = jnp.dot(x_ref[...].astype(w.dtype), w,
                 preferred_element_type=jnp.float32)
    xp = xp + bw_ref[...].astype(jnp.float32)
    # Direct per-gate stores (no concatenate temp).
    for g in range(4):
        out_ref[:, g * H:(g + 1) * H] = _layer_norm(
            xp[:, g * H:(g + 1) * H], gw_ref[g:g + 1, :], bbw_ref[g:g + 1, :]
        ).astype(out_ref.dtype)


def _x_projection(x_flat, W, bW, gW, betW, H, out_dtype, row_block, vmem_limit):
    M, D = x_flat.shape
    # Cap the row block by the VMEM budget: double-buffered x + xg streams plus
    # a single-buffered W copy, with a few MiB of headroom.
    w_bytes = int(W.size) * W.dtype.itemsize
    per_row = 2 * (D * 4 + 4 * H * jnp.dtype(out_dtype).itemsize)
    avail = max(vmem_limit - w_bytes - (4 << 20), 0)
    rb_cap = max(8, (avail // max(per_row, 1)) // 8 * 8)
    row_block = int(max(8, min(row_block, rb_cap)))

    # Prefer an exact multiple-of-8 divisor of M; otherwise pad M (never fall
    # back to loading the whole array in one tile).
    best = None
    for d in range(8, min(row_block, M) + 1, 8):
        if M % d == 0:
            best = d
    if best is not None:
        rb, m_pad = best, M
    else:
        rb = min(row_block, ((M + 7) // 8) * 8)
        m_pad = ((M + rb - 1) // rb) * rb
    if m_pad != M:
        x_flat = jnp.pad(x_flat, ((0, m_pad - M), (0, 0)))

    # TODO(synk): for very large D*4H, add a gate (or K) grid axis so the W and
    # output blocks shrink 4x instead of holding the full (D, 4H) W per tile.
    out = pl.pallas_call(
        functools.partial(_xproj_kernel, hidden_dim=H),
        out_shape=jax.ShapeDtypeStruct((m_pad, 4 * H), out_dtype),
        grid_spec=pltpu.PrefetchScalarGridSpec(
            num_scalar_prefetch=0,
            grid=(m_pad // rb,),
            in_specs=[
                pl.BlockSpec((rb, D), lambda m: (m, 0)),   # x rows (streamed)
                _invariant_spec((D, 4 * H)),               # W       (resident)
                _invariant_spec((1, 4 * H)),               # b_W
                _invariant_spec((4, H)),                   # LN gamma (W path)
                _invariant_spec((4, H)),                   # LN beta  (W path)
            ],
            out_specs=pl.BlockSpec((rb, 4 * H), lambda m: (m, 0)),
        ),
        compiler_params=pltpu.CompilerParams(
            dimension_semantics=("parallel",),
            vmem_limit_bytes=vmem_limit),
    )(x_flat, W, bW, gW, betW)
    return out[:M] if m_pad != M else out


# --------------------------------------------------------------------------
# Recurrent kernel: h_prev @ U + h-path LN + gate/cell update per step.
# Layout is batch-major: xg (N, T, 4H), out (N, T, H).
# --------------------------------------------------------------------------
def _recurrent_kernel(xg_ref, u_ref, bu_ref, gu_ref, bbu_ref, h0_ref, c0_ref,
                      out_ref, hn_ref, cn_ref, h_sc, c_sc,
                      *, hidden_dim, t_block):
    H = hidden_dim
    tb = pl.program_id(1)

    @pl.when(tb == 0)
    def _():  # new batch block / start of sequence: (re)load the carries
        h_sc[...] = h0_ref[...].astype(jnp.float32)
        c_sc[...] = c0_ref[...].astype(jnp.float32)

    bu = bu_ref[...].astype(jnp.float32)       # (1, 4H) — VPU-broadcast at use

    h = h_sc[...]
    c = c_sc[...]
    # Static Python loop over the time block: tt is concrete, so the xg/out
    # sublane slices below are static (no dynamic-slice relayout).
    # TODO(synk): for very large t_block switch to a partially-unrolled
    # lax.fori_loop to bound vreg live ranges (spill-bound regime).
    for tt in range(t_block):
        xg = xg_ref[:, tt, :].astype(jnp.float32)                # (Nb, 4H)
        hp = jnp.dot(h.astype(u_ref.dtype), u_ref[...],
                     preferred_element_type=jnp.float32) + bu
        gates = []
        for g in range(4):
            # TODO(synk): micro-opt — fold the per-gate mean into the MXU via an
            # appended row-sum column of U to halve the XLU reductions per step.
            hg = _layer_norm(hp[:, g * H:(g + 1) * H],
                             gu_ref[g:g + 1, :], bbu_ref[g:g + 1, :])
            gates.append(xg[:, g * H:(g + 1) * H] + hg)
        f_t = jax.nn.sigmoid(gates[0])
        i_t = jax.nn.sigmoid(gates[1])
        o_t = jax.nn.sigmoid(gates[2])
        c_hat = jnp.tanh(gates[3])
        c = f_t * c + i_t * c_hat
        h = o_t * jnp.tanh(c)
        out_ref[:, tt, :] = h.astype(out_ref.dtype)

    h_sc[...] = h
    c_sc[...] = c
    # Written every grid step (last write wins) — no end-only init dependence.
    hn_ref[...] = h.astype(hn_ref.dtype)
    cn_ref[...] = c.astype(cn_ref.dtype)


# --------------------------------------------------------------------------
# Wrapper
# --------------------------------------------------------------------------
def layer_norm_lstm(inputs, params, init_states=None, batch_first=True,
                    time_block=16, batch_block=None,
                    matmul_dtype=jnp.bfloat16, row_block=1024):
    """inputs: (N, T, D) if batch_first else (T, N, D). Returns (outputs, (h, c))."""
    if not batch_first:
        inputs = jnp.transpose(inputs, (1, 0, 2))  # internal layout is batch-major
    N, T, D = inputs.shape
    W, bW, gW, betW, U, bU, gU, betU = params
    H = U.shape[0]

    if matmul_dtype is not None:   # bf16 MXU operands by default; f32 accumulation
        W = W.astype(matmul_dtype)
        U = U.astype(matmul_dtype)
    if matmul_dtype is not None and jnp.dtype(matmul_dtype) == jnp.dtype(jnp.bfloat16):
        xg_dtype = jnp.bfloat16    # halve the dominant streamed input of the RNN
    else:
        xg_dtype = jnp.float32

    if init_states is None:
        h0 = jnp.zeros((N, H), jnp.float32)
        c0 = jnp.zeros((N, H), jnp.float32)
    else:
        h0, c0 = init_states
        h0 = h0.astype(jnp.float32)
        c0 = c0.astype(jnp.float32)

    vmem_limit = _vmem_limit_bytes()

    # ---- 1) Hoisted x path over the whole sequence (one big batch-major GEMM) ----
    xg = _x_projection(inputs.reshape(N * T, D), W, bW, gW, betW, H,
                       xg_dtype, row_block, vmem_limit)
    xg = xg.reshape(N, T, 4 * H)                    # (N, T, 4H) — no transposes

    # ---- 2) Batch-sharded, time-blocked recurrent kernel (stays batch-major) ----
    # On v7x pick batch_block so N // n_block >= 2 (the 'parallel' axis then
    # actually spans both TensorCores).
    n_block = N if batch_block is None else int(batch_block)
    assert N % n_block == 0, "batch_block must divide the batch size"
    assert n_block == N or n_block % 8 == 0, "batch_block must be a multiple of 8"

    # Cap the time block by the VMEM budget: xg + out streams double-buffered,
    # U single-buffered, a few MiB headroom.
    u_bytes = int(U.size) * U.dtype.itemsize
    per_t = 2 * n_block * (4 * H * jnp.dtype(xg_dtype).itemsize + H * 4)
    avail = max(vmem_limit - u_bytes - (4 << 20), per_t)
    time_block = int(max(8, min(time_block, avail // per_t)))
    t_block = _pick_t_block(T, time_block)
    grid = (N // n_block, T // t_block)

    batch_map = lambda nb, tb: (nb, 0)
    seq_map = lambda nb, tb: (nb, tb, 0)

    out, h_n, c_n = pl.pallas_call(
        functools.partial(_recurrent_kernel, hidden_dim=H, t_block=t_block),
        out_shape=(
            jax.ShapeDtypeStruct((N, T, H), jnp.float32),
            jax.ShapeDtypeStruct((N, H), jnp.float32),
            jax.ShapeDtypeStruct((N, H), jnp.float32),
        ),
        grid_spec=pltpu.PrefetchScalarGridSpec(
            num_scalar_prefetch=0,
            grid=grid,
            in_specs=[
                pl.BlockSpec((n_block, t_block, 4 * H), seq_map),  # precomputed xg
                _invariant_spec((H, 4 * H)),                        # U (resident, 1-buf)
                _invariant_spec((1, 4 * H)),                        # b_U
                _invariant_spec((4, H)),                            # LN gamma (U path)
                _invariant_spec((4, H)),                            # LN beta  (U path)
                pl.BlockSpec((n_block, H), batch_map),              # h0
                pl.BlockSpec((n_block, H), batch_map),              # c0
            ],
            out_specs=[
                pl.BlockSpec((n_block, t_block, H), seq_map),       # outputs
                pl.BlockSpec((n_block, H), batch_map),              # h_N
                pl.BlockSpec((n_block, H), batch_map),              # c_N
            ],
            scratch_shapes=[
                pltpu.VMEM((n_block, H), jnp.float32),              # h carry
                pltpu.VMEM((n_block, H), jnp.float32),              # c carry
            ],
        ),
        compiler_params=pltpu.CompilerParams(
            dimension_semantics=("parallel", "arbitrary"),  # batch || , time seq
            vmem_limit_bytes=vmem_limit),
    )(xg, U, bU, gU, betU, h0, c0)

    if not batch_first:
        out = jnp.transpose(out, (1, 0, 2))
    return out, (h_n, c_n)


# ---------------- pure-JAX reference (torch-style two-pass LN) ----------------
def _reference(inputs, params, batch_first=True):
    if batch_first:
        inputs = jnp.transpose(inputs, (1, 0, 2))
    T, N, D = inputs.shape
    W, bW, gW, betW, U, bU, gU, betU = params
    H = U.shape[0]

    def ln(z, g, b):
        mu = z.mean(-1, keepdims=True)
        var = ((z - mu) ** 2).mean(-1, keepdims=True)
        return (z - mu) / jnp.sqrt(var + EPS) * g + b

    h = jnp.zeros((N, H), jnp.float32)
    c = jnp.zeros((N, H), jnp.float32)
    outs = []
    for t in range(T):
        xp = inputs[t] @ W + bW[0]
        hp = h @ U + bU[0]
        gs = []
        for g in range(4):
            xg = ln(xp[:, g * H:(g + 1) * H], gW[g], betW[g])
            hg = ln(hp[:, g * H:(g + 1) * H], gU[g], betU[g])
            gs.append(xg + hg)
        f_t = jax.nn.sigmoid(gs[0])
        i_t = jax.nn.sigmoid(gs[1])
        o_t = jax.nn.sigmoid(gs[2])
        c_hat = jnp.tanh(gs[3])
        c = f_t * c + i_t * c_hat
        h = o_t * jnp.tanh(c)
        outs.append(h)
    out = jnp.stack(outs, 0)
    if batch_first:
        out = jnp.transpose(out, (1, 0, 2))
    return out, (h, c)


def _init_params(key, input_dim, hidden_dim):
    """Deterministic synthetic params matching the module's shapes."""
    ks = jax.random.split(key, 8)
    W = jax.random.normal(ks[0], (input_dim, 4 * hidden_dim), jnp.float32) * 0.1
    bW = jax.random.normal(ks[1], (1, 4 * hidden_dim), jnp.float32) * 0.05
    U = jax.random.normal(ks[2], (hidden_dim, 4 * hidden_dim), jnp.float32) * 0.1
    bU = jax.random.normal(ks[3], (1, 4 * hidden_dim), jnp.float32) * 0.05
    gW = 1.0 + 0.1 * jax.random.normal(ks[4], (4, hidden_dim), jnp.float32)
    betW = 0.1 * jax.random.normal(ks[5], (4, hidden_dim), jnp.float32)
    gU = 1.0 + 0.1 * jax.random.normal(ks[6], (4, hidden_dim), jnp.float32)
    betU = 0.1 * jax.random.normal(ks[7], (4, hidden_dim), jnp.float32)
    return (W, bW, gW, betW, U, bU, gU, betU)


if __name__ == "__main__":
    key = jax.random.PRNGKey(0)
    k_x, k_p = jax.random.split(key)

    N, T, D, H = 2, 8, 16, 32
    x = jax.random.normal(k_x, (N, T, D), jnp.float32)        # batch_first input
    params = _init_params(k_p, D, H)

    ref_out, (ref_h, ref_c) = _reference(x, params, batch_first=True)

    # Pure-f32 path: tight tolerance vs the torch-style reference.
    out, (h_n, c_n) = layer_norm_lstm(x, params, batch_first=True, matmul_dtype=None)
    jax.block_until_ready(out)
    jax.block_until_ready(h_n)
    jax.block_until_ready(c_n)
    assert jnp.allclose(out, ref_out, atol=1e-4, rtol=1e-4)
    assert jnp.allclose(h_n, ref_h, atol=1e-4, rtol=1e-4)
    assert jnp.allclose(c_n, ref_c, atol=1e-4, rtol=1e-4)

    # Default throughput path: bf16 MXU operands + bf16 xg stream, f32 accumulation.
    out_bf, (h_bf, c_bf) = layer_norm_lstm(x, params, batch_first=True)
    jax.block_until_ready(out_bf)
    jax.block_until_ready(h_bf)
    jax.block_until_ready(c_bf)
    assert jnp.allclose(out_bf, ref_out, atol=1e-1, rtol=1e-1)
    assert jnp.allclose(h_bf, ref_h, atol=1e-1, rtol=1e-1)
    assert jnp.allclose(c_bf, ref_c, atol=1e-1, rtol=1e-1)

    print("KERNEL_OK")
</pallas_src>

<mosaic_0001>
module attributes {stable_mosaic.version = 11 : i64} {
  func.func @_xproj_kernel(%arg0: i32, %arg1: memref<16x16xf32, #tpu.memory_space<vmem>>, %arg2: memref<16x128xf32, #tpu.memory_space<vmem>>, %arg3: memref<1x128xf32, #tpu.memory_space<vmem>>, %arg4: memref<4x32xf32, #tpu.memory_space<vmem>>, %arg5: memref<4x32xf32, #tpu.memory_space<vmem>>, %arg6: memref<16x128xf32, #tpu.memory_space<vmem>>) attributes {dimension_semantics = [#tpu.dimension_semantics<parallel>], iteration_bounds = array<i64: 1>, scalar_prefetch = 0 : i64, scratch_operands = 0 : i64, tpu.core_type = #tpu.core_type<tc>, window_params = [{transform_indices = @transform_0, window_bounds = array<i64: 16, 16>}, {pipeline_mode = #tpu.pipeline_mode<synchronous>, transform_indices = @transform_1, window_bounds = array<i64: 16, 128>}, {pipeline_mode = #tpu.pipeline_mode<synchronous>, transform_indices = @transform_2, window_bounds = array<i64: 1, 128>}, {pipeline_mode = #tpu.pipeline_mode<synchronous>, transform_indices = @transform_3, window_bounds = array<i64: 4, 32>}, {pipeline_mode = #tpu.pipeline_mode<synchronous>, transform_indices = @transform_4, window_bounds = array<i64: 4, 32>}, {transform_indices = @transform_5, window_bounds = array<i64: 16, 128>}]} {
    %c0 = arith.constant 0 : index
    %c0_0 = arith.constant 0 : index
    %0 = vector.load %arg2[%c0, %c0_0] : memref<16x128xf32, #tpu.memory_space<vmem>>, vector<16x128xf32>
    %c0_1 = arith.constant 0 : index
    %c0_2 = arith.constant 0 : index
    %1 = vector.load %arg1[%c0_1, %c0_2] : memref<16x16xf32, #tpu.memory_space<vmem>>, vector<16x16xf32>
    %cst = arith.constant dense<0.000000e+00> : vector<16x128xf32>
    %2 = tpu.matmul %1, %0, %cst {dimension_numbers = #tpu.dot_dimension_numbers<[1], [0], [0], [1], [0, 0, 1, 1], [], []>} : vector<16x16xf32>, vector<16x128xf32>, vector<16x128xf32> -> vector<16x128xf32>
    %c0_3 = arith.constant 0 : index
    %c0_4 = arith.constant 0 : index
    %3 = vector.load %arg3[%c0_3, %c0_4] : memref<1x128xf32, #tpu.memory_space<vmem>>, vector<1x128xf32>
    %4 = vector.broadcast %3 : vector<1x128xf32> to vector<16x128xf32>
    %5 = arith.addf %2, %4 : vector<16x128xf32>
    %6 = vector.extract_strided_slice %5 {offsets = [0, 0], sizes = [16, 32], strides = [1, 1]} : vector<16x128xf32> to vector<16x32xf32>
    %c0_5 = arith.constant 0 : index
    %c0_6 = arith.constant 0 : index
    %7 = vector.load %arg4[%c0_5, %c0_6] : memref<4x32xf32, #tpu.memory_space<vmem>>, vector<1x32xf32>
    %c0_7 = arith.constant 0 : index
    %c0_8 = arith.constant 0 : index
    %8 = vector.load %arg5[%c0_7, %c0_8] : memref<4x32xf32, #tpu.memory_space<vmem>>, vector<1x32xf32>
    %cst_9 = arith.constant dense<0.000000e+00> : vector<16xf32>
    %9 = vector.multi_reduction <add>, %6, %cst_9 [1] : vector<16x32xf32> to vector<16xf32>
    %10 = vector.shape_cast %9 : vector<16xf32> to vector<16x1xf32>
    %cst_10 = arith.constant 3.200000e+01 : f32
    %11 = vector.broadcast %cst_10 : f32 to vector<16x1xf32>
    %12 = arith.divf %10, %11 : vector<16x1xf32>
    %13 = vector.broadcast %12 : vector<16x1xf32> to vector<16x32xf32>
    %14 = arith.subf %6, %13 : vector<16x32xf32>
    %15 = arith.mulf %14, %14 : vector<16x32xf32>
    %cst_11 = arith.constant dense<0.000000e+00> : vector<16xf32>
    %16 = vector.multi_reduction <add>, %15, %cst_11 [1] : vector<16x32xf32> to vector<16xf32>
    %17 = vector.shape_cast %16 : vector<16xf32> to vector<16x1xf32>
    %cst_12 = arith.constant 3.200000e+01 : f32
    %18 = vector.broadcast %cst_12 : f32 to vector<16x1xf32>
    %19 = arith.divf %17, %18 : vector<16x1xf32>
    %cst_13 = arith.constant 9.99999974E-6 : f32
    %20 = vector.broadcast %cst_13 : f32 to vector<16x1xf32>
    %21 = arith.addf %19, %20 : vector<16x1xf32>
    %22 = math.rsqrt %21 : vector<16x1xf32>
    %23 = vector.broadcast %22 : vector<16x1xf32> to vector<16x32xf32>
    %24 = arith.mulf %14, %23 : vector<16x32xf32>
    %25 = vector.broadcast %7 : vector<1x32xf32> to vector<16x32xf32>
    %26 = arith.mulf %24, %25 : vector<16x32xf32>
    %27 = vector.broadcast %8 : vector<1x32xf32> to vector<16x32xf32>
    %28 = arith.addf %26, %27 : vector<16x32xf32>
    %c0_14 = arith.constant 0 : index
    %c0_15 = arith.constant 0 : index
    %29 = vector.load %arg6[%c0_14, %c0_15] : memref<16x128xf32, #tpu.memory_space<vmem>>, vector<16x32xf32>
    tpu.vector_store %arg6[%c0_14, %c0_15], %28 {strides = array<i32>} : memref<16x128xf32, #tpu.memory_space<vmem>>, vector<16x32xf32>,
    %30 = vector.extract_strided_slice %5 {offsets = [0, 32], sizes = [16, 32], strides = [1, 1]} : vector<16x128xf32> to vector<16x32xf32>
    %c1 = arith.constant 1 : index
    %c0_16 = arith.constant 0 : index
    %31 = vector.load %arg4[%c1, %c0_16] : memref<4x32xf32, #tpu.memory_space<vmem>>, vector<1x32xf32>
    %c1_17 = arith.constant 1 : index
    %c0_18 = arith.constant 0 : index
    %32 = vector.load %arg5[%c1_17, %c0_18] : memref<4x32xf32, #tpu.memory_space<vmem>>, vector<1x32xf32>
    %cst_19 = arith.constant dense<0.000000e+00> : vector<16xf32>
    %33 = vector.multi_reduction <add>, %30, %cst_19 [1] : vector<16x32xf32> to vector<16xf32>
    %34 = vector.shape_cast %33 : vector<16xf32> to vector<16x1xf32>
    %cst_20 = arith.constant 3.200000e+01 : f32
    %35 = vector.broadcast %cst_20 : f32 to vector<16x1xf32>
    %36 = arith.divf %34, %35 : vector<16x1xf32>
    %37 = vector.broadcast %36 : vector<16x1xf32> to vector<16x32xf32>
    %38 = arith.subf %30, %37 : vector<16x32xf32>
    %39 = arith.mulf %38, %38 : vector<16x32xf32>
    %cst_21 = arith.constant dense<0.000000e+00> : vector<16xf32>
    %40 = vector.multi_reduction <add>, %39, %cst_21 [1] : vector<16x32xf32> to vector<16xf32>
    %41 = vector.shape_cast %40 : vector<16xf32> to vector<16x1xf32>
    %cst_22 = arith.constant 3.200000e+01 : f32
    %42 = vector.broadcast %cst_22 : f32 to vector<16x1xf32>
    %43 = arith.divf %41, %42 : vector<16x1xf32>
    %cst_23 = arith.constant 9.99999974E-6 : f32
    %44 = vector.broadcast %cst_23 : f32 to vector<16x1xf32>
    %45 = arith.addf %43, %44 : vector<16x1xf32>
    %46 = math.rsqrt %45 : vector<16x1xf32>
    %47 = vector.broadcast %46 : vector<16x1xf32> to vector<16x32xf32>
    %48 = arith.mulf %38, %47 : vector<16x32xf32>
    %49 = vector.broadcast %31 : vector<1x32xf32> to vector<16x32xf32>
    %50 = arith.mulf %48, %49 : vector<16x32xf32>
    %51 = vector.broadcast %32 : vector<1x32xf32> to vector<16x32xf32>
    %52 = arith.addf %50, %51 : vector<16x32xf32>
    %c0_24 = arith.constant 0 : index
    %c32 = arith.constant 32 : index
    %53 = vector.load %arg6[%c0_24, %c32] : memref<16x128xf32, #tpu.memory_space<vmem>>, vector<16x32xf32>
    tpu.vector_store %arg6[%c0_24, %c32], %52 {strides = array<i32>} : memref<16x128xf32, #tpu.memory_space<vmem>>, vector<16x32xf32>,
    %54 = vector.extract_strided_slice %5 {offsets = [0, 64], sizes = [16, 32], strides = [1, 1]} : vector<16x128xf32> to vector<16x32xf32>
    %c2 = arith.constant 2 : index
    %c0_25 = arith.constant 0 : index
    %55 = vector.load %arg4[%c2, %c0_25] : memref<4x32xf32, #tpu.memory_space<vmem>>, vector<1x32xf32>
    %c2_26 = arith.constant 2 : index
    %c0_27 = arith.constant 0 : index
    %56 = vector.load %arg5[%c2_26, %c0_27] : memref<4x32xf32, #tpu.memory_space<vmem>>, vector<1x32xf32>
    %cst_28 = arith.constant dense<0.000000e+00> : vector<16xf32>
    %57 = vector.multi_reduction <add>, %54, %cst_28 [1] : vector<16x32xf32> to vector<16xf32>
    %58 = vector.shape_cast %57 : vector<16xf32> to vector<16x1xf32>
    %cst_29 = arith.constant 3.200000e+01 : f32
    %59 = vector.broadcast %cst_29 : f32 to vector<16x1xf32>
    %60 = arith.divf %58, %59 : vector<16x1xf32>
    %61 = vector.broadcast %60 : vector<16x1xf32> to vector<16x32xf32>
    %62 = arith.subf %54, %61 : vector<16x32xf32>
    %63 = arith.mulf %62, %62 : vector<16x32xf32>
    %cst_30 = arith.constant dense<0.000000e+00> : vector<16xf32>
    %64 = vector.multi_reduction <add>, %63, %cst_30 [1] : vector<16x32xf32> to vector<16xf32>
    %65 = vector.shape_cast %64 : vector<16xf32> to vector<16x1xf32>
    %cst_31 = arith.constant 3.200000e+01 : f32
    %66 = vector.broadcast %cst_31 : f32 to vector<16x1xf32>
    %67 = arith.divf %65, %66 : vector<16x1xf32>
    %cst_32 = arith.constant 9.99999974E-6 : f32
    %68 = vector.broadcast %cst_32 : f32 to vector<16x1xf32>
    %69 = arith.addf %67, %68 : vector<16x1xf32>
    %70 = math.rsqrt %69 : vector<16x1xf32>
    %71 = vector.broadcast %70 : vector<16x1xf32> to vector<16x32xf32>
    %72 = arith.mulf %62, %71 : vector<16x32xf32>
    %73 = vector.broadcast %55 : vector<1x32xf32> to vector<16x32xf32>
    %74 = arith.mulf %72, %73 : vector<16x32xf32>
    %75 = vector.broadcast %56 : vector<1x32xf32> to vector<16x32xf32>
    %76 = arith.addf %74, %75 : vector<16x32xf32>
    %c0_33 = arith.constant 0 : index
    %c64 = arith.constant 64 : index
    %77 = vector.load %arg6[%c0_33, %c64] : memref<16x128xf32, #tpu.memory_space<vmem>>, vector<16x32xf32>
    tpu.vector_store %arg6[%c0_33, %c64], %76 {strides = array<i32>} : memref<16x128xf32, #tpu.memory_space<vmem>>, vector<16x32xf32>,
    %78 = vector.extract_strided_slice %5 {offsets = [0, 96], sizes = [16, 32], strides = [1, 1]} : vector<16x128xf32> to vector<16x32xf32>
    %c3 = arith.constant 3 : index
    %c0_34 = arith.constant 0 : index
    %79 = vector.load %arg4[%c3, %c0_34] : memref<4x32xf32, #tpu.memory_space<vmem>>, vector<1x32xf32>
    %c3_35 = arith.constant 3 : index
    %c0_36 = arith.constant 0 : index
    %80 = vector.load %arg5[%c3_35, %c0_36] : memref<4x32xf32, #tpu.memory_space<vmem>>, vector<1x32xf32>
    %cst_37 = arith.constant dense<0.000000e+00> : vector<16xf32>
    %81 = vector.multi_reduction <add>, %78, %cst_37 [1] : vector<16x32xf32> to vector<16xf32>
    %82 = vector.shape_cast %81 : vector<16xf32> to vector<16x1xf32>
    %cst_38 = arith.constant 3.200000e+01 : f32
    %83 = vector.broadcast %cst_38 : f32 to vector<16x1xf32>
    %84 = arith.divf %82, %83 : vector<16x1xf32>
    %85 = vector.broadcast %84 : vector<16x1xf32> to vector<16x32xf32>
    %86 = arith.subf %78, %85 : vector<16x32xf32>
    %87 = arith.mulf %86, %86 : vector<16x32xf32>
    %cst_39 = arith.constant dense<0.000000e+00> : vector<16xf32>
    %88 = vector.multi_reduction <add>, %87, %cst_39 [1] : vector<16x32xf32> to vector<16xf32>
    %89 = vector.shape_cast %88 : vector<16xf32> to vector<16x1xf32>
    %cst_40 = arith.constant 3.200000e+01 : f32
    %90 = vector.broadcast %cst_40 : f32 to vector<16x1xf32>
    %91 = arith.divf %89, %90 : vector<16x1xf32>
    %cst_41 = arith.constant 9.99999974E-6 : f32
    %92 = vector.broadcast %cst_41 : f32 to vector<16x1xf32>
    %93 = arith.addf %91, %92 : vector<16x1xf32>
    %94 = math.rsqrt %93 : vector<16x1xf32>
    %95 = vector.broadcast %94 : vector<16x1xf32> to vector<16x32xf32>
    %96 = arith.mulf %86, %95 : vector<16x32xf32>
    %97 = vector.broadcast %79 : vector<1x32xf32> to vector<16x32xf32>
    %98 = arith.mulf %96, %97 : vector<16x32xf32>
    %99 = vector.broadcast %80 : vector<1x32xf32> to vector<16x32xf32>
    %100 = arith.addf %98, %99 : vector<16x32xf32>
    %c0_42 = arith.constant 0 : index
    %c96 = arith.constant 96 : index
    %101 = vector.load %arg6[%c0_42, %c96] : memref<16x128xf32, #tpu.memory_space<vmem>>, vector<16x32xf32>
    tpu.vector_store %arg6[%c0_42, %c96], %100 {strides = array<i32>} : memref<16x128xf32, #tpu.memory_space<vmem>>, vector<16x32xf32>,
    return
  }
  func.func @transform_0(%arg0: i32) -> (i32, i32) {
    %c0_i32 = arith.constant 0 : i32
    %c0_i32_0 = arith.constant 0 : i32
    return %arg0, %c0_i32 : i32, i32
  }
  func.func @transform_1(%arg0: i32) -> (i32, i32) {
    %c0_i32 = arith.constant 0 : i32
    %c0_i32_0 = arith.constant 0 : i32
    %c0_i32_1 = arith.constant 0 : i32
    return %c0_i32, %c0_i32_0 : i32, i32
  }
  func.func @transform_2(%arg0: i32) -> (i32, i32) {
    %c0_i32 = arith.constant 0 : i32
    %c0_i32_0 = arith.constant 0 : i32
    %c0_i32_1 = arith.constant 0 : i32
    return %c0_i32, %c0_i32_0 : i32, i32
  }
  func.func @transform_3(%arg0: i32) -> (i32, i32) {
    %c0_i32 = arith.constant 0 : i32
    %c0_i32_0 = arith.constant 0 : i32
    %c0_i32_1 = arith.constant 0 : i32
    return %c0_i32, %c0_i32_0 : i32, i32
  }
  func.func @transform_4(%arg0: i32) -> (i32, i32) {
    %c0_i32 = arith.constant 0 : i32
    %c0_i32_0 = arith.constant 0 : i32
    %c0_i32_1 = arith.constant 0 : i32
    return %c0_i32, %c0_i32_0 : i32, i32
  }
  func.func @transform_5(%arg0: i32) -> (i32, i32) {
    %c0_i32 = arith.constant 0 : i32
    %c0_i32_0 = arith.constant 0 : i32
    return %arg0, %c0_i32 : i32, i32
  }
}

</mosaic_0001>

<llo_original>
// kernel: tpu_custom_call.1
$region0: #{tpu_custom_call.1}
  #allocation0 [shape = 'u32[]', space=smem, size = 0x4, offset = 0x4, fixed_abs, tag = 'smem constant byte address 0x4 - core index']
  #allocation1 [shape = 'u32[144,128]{1,0:T(1,128)}', space=vmem, size = 0x12000, scoped, tag = 'internal scratch']
  %s0 = inlined_call_operand.hbm [shape: f32[16,16], index: 0, kind: input, shape index: {}]
  %s1 = inlined_call_operand.hbm [shape: f32[16,128], index: 1, kind: input, shape index: {}]
  %s2 = inlined_call_operand.vmem [shape: f32[1,128], index: 2, kind: input, shape index: {}]
  %s3 = inlined_call_operand.vmem [shape: f32[4,32], index: 3, kind: input, shape index: {}]
  %s4 = inlined_call_operand.hbm [shape: f32[4,32], index: 4, kind: input, shape index: {}]
  %s5 = inlined_call_operand.hbm [shape: f32[16,128], index: 5, kind: output, shape index: {}]
  %s6 = sld [smem:[#allocation0]]
  $region42: #{tpu_custom_call.1} parent=0
    _
  %s8 = ssub.s32 1, %s6
  %s9 = scalar_select 0, %s8, %s6
  $region1: #{tpu_custom_call.1} parent=0
    #allocation2 [shape = 'u8[8192]{0}', space=vmem, size = 0x2000, scoped, tag = 'input window, operand 0, single buffered']
    #allocation3 [shape = 's32[1]{0}', space=sflag, size = 0x4, scoped, tag = 'scoped memory for tpu_custom_call.1']
    #allocation4 [shape = 's32[1]{0}', space=sflag, size = 0x4, scoped, tag = 'scoped memory for tpu_custom_call.1']
    #allocation5 [shape = 'u8[8192]{0}', space=vmem, size = 0x2000, scoped, tag = 'input window, operand 1, single buffered']
    #allocation6 [shape = 's32[1]{0}', space=sflag, size = 0x4, scoped, tag = 'scoped memory for tpu_custom_call.1']
    #allocation7 [shape = 'u8[2048]{0}', space=vmem, size = 0x800, scoped, tag = 'input window, operand 4, single buffered']
    #allocation8 [shape = 'u8[8192]{0}', space=vmem, size = 0x2000, scoped, tag = 'output window, operand 0, single buffered']
    %10 = vsyncpa [#allocation3], 0
    %11 = vsyncpa [#allocation6], 0
    %12 = vsyncpa [#allocation4], 0
    // Predicated region
    $region2: #{tpu_custom_call.1} parent=1 // pred_check
      _
    $region3: #{tpu_custom_call.1} parent=1 // pred_check_branch
      %14 = sbr.rel (0) target = $region5
    $region4: #{tpu_custom_call.1} parent=1 // pred_region
      %s16 = ssub.s32 256, 256
      %17 = vsyncadd [#allocation3], %s16
      %s18 = sshll.u32 [#allocation2], 4
      %s19 = int_to_ptr.vmem [resolvable:$true] %s18
      %24 = dma.hbm_to_vmem [thread:$0]  %s0, 256, %s19, [#allocation3], 128, 128, 8
    $region5: #{tpu_custom_call.1} parent=1 // pred_fallthru
      _
    // Predicated region
    $region6: #{tpu_custom_call.1} parent=1 // pred_check
      _
    $region7: #{tpu_custom_call.1} parent=1 // pred_check_branch
      %26 = sbr.rel (0) target = $region9
    $region8: #{tpu_custom_call.1} parent=1 // pred_region
      %s28 = ssub.s32 256, 256
      %29 = vsyncadd [#allocation6], %s28
      %s30 = sshll.u32 [#allocation5], 4
      %s31 = int_to_ptr.vmem [resolvable:$true] %s30
      %36 = dma.hbm_to_vmem [thread:$0]  %s1, 256, %s31, [#allocation6], 128, 128, 8
    $region9: #{tpu_custom_call.1} parent=1 // pred_fallthru
      _
    // Predicated region
    $region10: #{tpu_custom_call.1} parent=1 // pred_check
      _
    $region11: #{tpu_custom_call.1} parent=1 // pred_check_branch
      %38 = sbr.rel (0) target = $region13
    $region12: #{tpu_custom_call.1} parent=1 // pred_region
      _
    $region13: #{tpu_custom_call.1} parent=1 // pred_fallthru
      _
    // Predicated region
    $region14: #{tpu_custom_call.1} parent=1 // pred_check
      _
    $region15: #{tpu_custom_call.1} parent=1 // pred_check_branch
      %40 = sbr.rel (0) target = $region17
    $region16: #{tpu_custom_call.1} parent=1 // pred_region
      _
    $region17: #{tpu_custom_call.1} parent=1 // pred_fallthru
      _
    // Predicated region
    $region18: #{tpu_custom_call.1} parent=1 // pred_check
      _
    $region19: #{tpu_custom_call.1} parent=1 // pred_check_branch
      %42 = sbr.rel (0) target = $region21
    $region20: #{tpu_custom_call.1} parent=1 // pred_region
      %s44 = ssub.s32 64, 64
      %45 = vsyncadd [#allocation6], %s44
      %s47 = sshll.u32 [#allocation7], 4
      %s48 = int_to_ptr.vmem [resolvable:$true] %s47
      %50 = dma.hbm_to_vmem [thread:$0]  %s4, 64, %s48, [#allocation6]
    $region21: #{tpu_custom_call.1} parent=1 // pred_fallthru
      _
    // Predicated region
    $region22: #{tpu_custom_call.1} parent=1 // pred_check
      _
    $region23: #{tpu_custom_call.1} parent=1 // pred_check_branch
      %52 = sbr.rel (0) target = $region25
    $region24: #{tpu_custom_call.1} parent=1 // pred_region
      %53 = dma.done [#allocation3], 256
    $region25: #{tpu_custom_call.1} parent=1 // pred_fallthru
      _
    // Predicated region
    $region26: #{tpu_custom_call.1} parent=1 // pred_check
      _
    $region27: #{tpu_custom_call.1} parent=1 // pred_check_branch
      %55 = sbr.rel (0) target = $region29
    $region28: #{tpu_custom_call.1} parent=1 // pred_region
      %56 = dma.done [#allocation6], 256
    $region29: #{tpu_custom_call.1} parent=1 // pred_fallthru
      _
    // Predicated region
    $region30: #{tpu_custom_call.1} parent=1 // pred_check
      _
    $region31: #{tpu_custom_call.1} parent=1 // pred_check_branch
      %58 = sbr.rel (0) target = $region33
    $region32: #{tpu_custom_call.1} parent=1 // pred_region
      %59 = dma.done [#allocation6], 64
    $region33: #{tpu_custom_call.1} parent=1 // pred_fallthru
      _
    %v60 = vld [vmem:[#allocation5] sm:$0xff]
    %v61 = vld [vmem:[#allocation5 + $0x8] sm:$0xff]
    %v62 = vld [vmem:[#allocation2] sm:$0xff]
    %v63 = vld [vmem:[#allocation2 + $0x8] sm:$0xff]
    %v64 = vld [vmem:[%s2] sm:$0x1]
    %v66 = vlaneseq
    %v67 = vshrl.u32 %v66, 7
    %v68 = vsub.s32 0, %v67
    %v69 = vrot.slane %v64, %v68
    %vm71 = vcmask 130048
    %v73 = vsel %vm71, %v62, 0
    %v76 = vsel %vm71, %v63, 0
    %78 = vmatprep.subr.mxu0 0.0
    %79 = vmatpush1.msra.mxu0 0.0
    %80 = vmatprep.subr.mxu0 0.0
    %81 = vmatpush1.msra.mxu0 0.0
    %82 = vmatprep.subr.mxu0 0.0
    %83 = vmatpush1.msra.mxu0 0.0
    %84 = vmatprep.subr.mxu0 0.0
    %85 = vmatpush1.msra.mxu0 0.0
    %86 = vmatprep.subr.mxu0 0.0
    %87 = vmatpush1.msra.mxu0 0.0
    %88 = vmatprep.subr.mxu0 0.0
    %89 = vmatpush1.msra.mxu0 0.0
    %90 = vmatprep.subr.mxu0 0.0
    %91 = vmatpush1.msra.mxu0 0.0
    %92 = vmatprep.subr.mxu0 0.0
    %93 = vmatpush1.msra.mxu0 0.0
    %94 = vmatprep.subr.mxu0 0.0
    %95 = vmatpush1.msra.mxu0 0.0
    %96 = vmatprep.subr.mxu0 0.0
    %97 = vmatpush1.msra.mxu0 0.0
    %98 = vmatprep.subr.mxu0 0.0
    %99 = vmatpush1.msra.mxu0 0.0
    %100 = vmatprep.subr.mxu0 0.0
    %101 = vmatpush1.msra.mxu0 0.0
    %102 = vmatprep.subr.mxu0 0.0
    %103 = vmatpush1.msra.mxu0 0.0
    %104 = vmatprep.subr.mxu0 0.0
    %105 = vmatpush1.msra.mxu0 0.0
    %106 = vmatprep.subr.mxu0 0.0
    %107 = vmatpush1.msra.mxu0 %v61
    %108 = vmatprep.subr.mxu0 0.0
    %109 = vmatpush1.msra.mxu0 %v60
    %110 = vmatprep.subr.mxu0 0.0
    %111 = vmatpush2.msra.mxu0 0.0
    %112 = vmatprep.subr.mxu0 0.0
    %113 = vmatpush2.msra.mxu0 0.0
    %114 = vmatprep.subr.mxu0 0.0
    %115 = vmatpush2.msra.mxu0 0.0
    %116 = vmatprep.subr.mxu0 0.0
    %117 = vmatpush2.msra.mxu0 0.0
    %118 = vmatprep.subr.mxu0 0.0
    %119 = vmatpush2.msra.mxu0 0.0
    %120 = vmatprep.subr.mxu0 0.0
    %121 = vmatpush2.msra.mxu0 0.0
    %122 = vmatprep.subr.mxu0 0.0
    %123 = vmatpush2.msra.mxu0 0.0
    %124 = vmatprep.subr.mxu0 0.0
    %125 = vmatpush2.msra.mxu0 0.0
    %126 = vmatprep.subr.mxu0 0.0
    %127 = vmatpush2.msra.mxu0 0.0
    %128 = vmatprep.subr.mxu0 0.0
    %129 = vmatpush2.msra.mxu0 0.0
    %130 = vmatprep.subr.mxu0 0.0
    %131 = vmatpush2.msra.mxu0 0.0
    %132 = vmatprep.subr.mxu0 0.0
    %133 = vmatpush2.msra.mxu0 0.0
    %134 = vmatprep.subr.mxu0 0.0
    %135 = vmatpush2.msra.mxu0 0.0
    %136 = vmatprep.subr.mxu0 0.0
    %137 = vmatpush2.msra.mxu0 0.0
    %138 = vmatprep.subr.mxu0 0.0
    %139 = vmatpush2.msra.mxu0 0.0
    %140 = vmatprep.subr.mxu0 0.0
    %141 = vmatpush2.msra.mxu0 0.0
    %142 = vmatprep.mubr.f32.mxu0 0.0
    %143 = vmatmul.mubr.f32.gmra.mxu0 %v73
    %v144 = vpop.f32.mrf.mxu0
    %v145 = vadd.f32 %v69, %v144
    %v146 = vpop.f32.mrf.mxu0
    %147 = vmatprep.mubr.f32.mxu0 0.0
    %148 = vmatmul.mubr.f32.gmra.mxu0 %v76
    %v149 = vpop.f32.mrf.mxu0
    %v150 = vadd.f32 %v69, %v149
    %v151 = vpop.f32.mrf.mxu0
    %152 = vdwg.mxu0
    %v153 = vld [vmem:[%s3] sm:$0x1]
    %v154 = vld [vmem:[#allocation7] sm:$0x1]
    %vm155 = vcmask 261120
    %v156 = vsel %vm155, %v145, 0.0
    %157 = vadd.xlane.f32.xlu0 %v156
    %v158 = vpop.xlane.xlu0 %157
    %v159 = vsel %vm155, %v150, 0.0
    %160 = vadd.xlane.f32.xlu0 %v159
    %v161 = vpop.xlane.xlu0 %160
    %v162 = vrcp.pop 32.0
    %v163 = vmul.f32 %v158, %v162
    %v164 = vmul.f32 %v161, %v162
    %v165 = vsub.f32 %v145, %v163
    %v166 = vsub.f32 %v150, %v164
    %v167 = vmul.f32 %v165, %v165
    %v168 = vmul.f32 %v166, %v166
    %v169 = vsel %vm155, %v167, 0.0
    %170 = vadd.xlane.f32.xlu0 %v169
    %v171 = vpop.xlane.xlu0 %170
    %v172 = vsel %vm155, %v168, 0.0
    %173 = vadd.xlane.f32.xlu0 %v172
    %v174 = vpop.xlane.xlu0 %173
    %v175 = vmul.f32 %v171, %v162
    %v176 = vmul.f32 %v174, %v162
    %v177 = vadd.f32 %v175, 1e-05
    %v178 = vadd.f32 %v176, 1e-05
    %v179 = vrsqrt.pop %v177
    %v180 = vrsqrt.pop %v178
    %v181 = vmul.f32 %v165, %v179
    %v182 = vmul.f32 %v166, %v180
    %v183 = vlaneseq
    %v184 = vshrl.u32 %v183, 7
    %v185 = vsub.s32 0, %v184
    %v186 = vrot.slane %v153, %v185
    %v187 = vmul.f32 %v181, %v186
    %v188 = vmul.f32 %v182, %v186
    %v189 = vlaneseq
    %v190 = vshrl.u32 %v189, 7
    %v191 = vsub.s32 0, %v190
    %v192 = vrot.slane %v154, %v191
    %v193 = vadd.f32 %v187, %v192
    %v194 = vadd.f32 %v188, %v192
    %195 = vst.msk [vmem:[#allocation8] sm:$0xff] %vm155, %v193
    %196 = vst.msk [vmem:[#allocation8 + $0x8] sm:$0xff] %vm155, %v194
    %v197 = vld [vmem:[%s3 + $0x1] sm:$0x1]
    %v198 = vld [vmem:[#allocation7 + $0x1] sm:$0x1]
    %201 = vrot.lane.b32.xlu0 %v145, 96
    %v202 = vpop.permute.xlu0 %201
    %203 = vrot.lane.b32.xlu0 %v150, 96
    %v204 = vpop.permute.xlu0 %203
    %v207 = vsel %vm155, %v202, 0.0
    %208 = vadd.xlane.f32.xlu0 %v207
    %v209 = vpop.xlane.xlu0 %208
    %v210 = vsel %vm155, %v204, 0.0
    %211 = vadd.xlane.f32.xlu0 %v210
    %v212 = vpop.xlane.xlu0 %211
    %v213 = vmul.f32 %v209, %v162
    %v214 = vmul.f32 %v212, %v162
    %v215 = vsub.f32 %v145, %v213
    %v216 = vsub.f32 %v150, %v214
    %v217 = vmul.f32 %v215, %v215
    %v218 = vmul.f32 %v216, %v216
    %221 = vrot.lane.b32.xlu0 %v217, 96
    %v222 = vpop.permute.xlu0 %221
    %223 = vrot.lane.b32.xlu0 %v218, 96
    %v224 = vpop.permute.xlu0 %223
    %v227 = vsel %vm155, %v222, 0.0
    %228 = vadd.xlane.f32.xlu0 %v227
    %v229 = vpop.xlane.xlu0 %228
    %v230 = vsel %vm155, %v224, 0.0
    %231 = vadd.xlane.f32.xlu0 %v230
    %v232 = vpop.xlane.xlu0 %231
    %v233 = vmul.f32 %v229, %v162
    %v234 = vmul.f32 %v232, %v162
    %v235 = vadd.f32 %v233, 1e-05
    %v236 = vadd.f32 %v234, 1e-05
    %v237 = vrsqrt.pop %v235
    %v238 = vrsqrt.pop %v236
    %v239 = vmul.f32 %v215, %v237
    %v240 = vmul.f32 %v216, %v238
    %v241 = vlaneseq
    %v242 = vshrl.u32 %v241, 7
    %v243 = vsub.s32 0, %v242
    %v244 = vrot.slane %v197, %v243
    %246 = vrot.lane.b32.xlu0 %v244, 32
    %v247 = vpop.permute.xlu0 %246
    %v249 = vmul.f32 %v239, %v247
    %v250 = vmul.f32 %v240, %v247
    %v251 = vlaneseq
    %v252 = vshrl.u32 %v251, 7
    %v253 = vsub.s32 0, %v252
    %v254 = vrot.slane %v198, %v253
    %256 = vrot.lane.b32.xlu0 %v254, 32
    %v257 = vpop.permute.xlu0 %256
    %v259 = vadd.f32 %v249, %v257
    %v260 = vadd.f32 %v250, %v257
    %vm261 = vcmask 523520
    %262 = vst.msk [vmem:[#allocation8] sm:$0xff] %vm261, %v259
    %263 = vst.msk [vmem:[#allocation8 + $0x8] sm:$0xff] %vm261, %v260
    %v264 = vld [vmem:[%s3 + $0x2] sm:$0x1]
    %v265 = vld [vmem:[#allocation7 + $0x2] sm:$0x1]
    %266 = vrot.lane.b32.xlu0 %v145, 64
    %v267 = vpop.permute.xlu0 %266
    %268 = vrot.lane.b32.xlu0 %v150, 64
    %v269 = vpop.permute.xlu0 %268
    %v272 = vsel %vm155, %v267, 0.0
    %273 = vadd.xlane.f32.xlu0 %v272
    %v274 = vpop.xlane.xlu0 %273
    %v275 = vsel %vm155, %v269, 0.0
    %276 = vadd.xlane.f32.xlu0 %v275
    %v277 = vpop.xlane.xlu0 %276
    %v278 = vmul.f32 %v274, %v162
    %v279 = vmul.f32 %v277, %v162
    %v280 = vsub.f32 %v145, %v278
    %v281 = vsub.f32 %v150, %v279
    %v282 = vmul.f32 %v280, %v280
    %v283 = vmul.f32 %v281, %v281
    %286 = vrot.lane.b32.xlu0 %v282, 64
    %v287 = vpop.permute.xlu0 %286
    %288 = vrot.lane.b32.xlu0 %v283, 64
    %v289 = vpop.permute.xlu0 %288
    %v292 = vsel %vm155, %v287, 0.0
    %293 = vadd.xlane.f32.xlu0 %v292
    %v294 = vpop.xlane.xlu0 %293
    %v295 = vsel %vm155, %v289, 0.0
    %296 = vadd.xlane.f32.xlu0 %v295
    %v297 = vpop.xlane.xlu0 %296
    %v298 = vmul.f32 %v294, %v162
    %v299 = vmul.f32 %v297, %v162
    %v300 = vadd.f32 %v298, 1e-05
    %v301 = vadd.f32 %v299, 1e-05
    %v302 = vrsqrt.pop %v300
    %v303 = vrsqrt.pop %v301
    %v304 = vmul.f32 %v280, %v302
    %v305 = vmul.f32 %v281, %v303
    %v306 = vlaneseq
    %v307 = vshrl.u32 %v306, 7
    %v308 = vsub.s32 0, %v307
    %v309 = vrot.slane %v264, %v308
    %311 = vrot.lane.b32.xlu0 %v309, 64
    %v312 = vpop.permute.xlu0 %311
    %v314 = vmul.f32 %v304, %v312
    %v315 = vmul.f32 %v305, %v312
    %v316 = vlaneseq
    %v317 = vshrl.u32 %v316, 7
    %v318 = vsub.s32 0, %v317
    %v319 = vrot.slane %v265, %v318
    %321 = vrot.lane.b32.xlu0 %v319, 64
    %v322 = vpop.permute.xlu0 %321
    %v324 = vadd.f32 %v314, %v322
    %v325 = vadd.f32 %v315, %v322
    %vm326 = vcmask 785920
    %327 = vst.msk [vmem:[#allocation8] sm:$0xff] %vm326, %v324
    %328 = vst.msk [vmem:[#allocation8 + $0x8] sm:$0xff] %vm326, %v325
    %v329 = vld [vmem:[%s3 + $0x3] sm:$0x1]
    %v330 = vld [vmem:[#allocation7 + $0x3] sm:$0x1]
    %331 = vrot.lane.b32.xlu0 %v145, 32
    %v332 = vpop.permute.xlu0 %331
    %333 = vrot.lane.b32.xlu0 %v150, 32
    %v334 = vpop.permute.xlu0 %333
    %v337 = vsel %vm155, %v332, 0.0
    %338 = vadd.xlane.f32.xlu0 %v337
    %v339 = vpop.xlane.xlu0 %338
    %v340 = vsel %vm155, %v334, 0.0
    %341 = vadd.xlane.f32.xlu0 %v340
    %v342 = vpop.xlane.xlu0 %341
    %v343 = vmul.f32 %v339, %v162
    %v344 = vmul.f32 %v342, %v162
    %v345 = vsub.f32 %v145, %v343
    %v346 = vsub.f32 %v150, %v344
    %v347 = vmul.f32 %v345, %v345
    %v348 = vmul.f32 %v346, %v346
    %351 = vrot.lane.b32.xlu0 %v347, 32
    %v352 = vpop.permute.xlu0 %351
    %353 = vrot.lane.b32.xlu0 %v348, 32
    %v354 = vpop.permute.xlu0 %353
    %v357 = vsel %vm155, %v352, 0.0
    %358 = vadd.xlane.f32.xlu0 %v357
    %v359 = vpop.xlane.xlu0 %358
    %v360 = vsel %vm155, %v354, 0.0
    %361 = vadd.xlane.f32.xlu0 %v360
    %v362 = vpop.xlane.xlu0 %361
    %v363 = vmul.f32 %v359, %v162
    %v364 = vmul.f32 %v362, %v162
    %v365 = vadd.f32 %v363, 1e-05
    %v366 = vadd.f32 %v364, 1e-05
    %v367 = vrsqrt.pop %v365
    %v368 = vrsqrt.pop %v366
    %v369 = vmul.f32 %v345, %v367
    %v370 = vmul.f32 %v346, %v368
    %v371 = vlaneseq
    %v372 = vshrl.u32 %v371, 7
    %v373 = vsub.s32 0, %v372
    %v374 = vrot.slane %v329, %v373
    %376 = vrot.lane.b32.xlu0 %v374, 96
    %v377 = vpop.permute.xlu0 %376
    %v379 = vmul.f32 %v369, %v377
    %v380 = vmul.f32 %v370, %v377
    %v381 = vlaneseq
    %v382 = vshrl.u32 %v381, 7
    %v383 = vsub.s32 0, %v382
    %v384 = vrot.slane %v330, %v383
    %386 = vrot.lane.b32.xlu0 %v384, 96
    %v387 = vpop.permute.xlu0 %386
    %v389 = vadd.f32 %v379, %v387
    %v390 = vadd.f32 %v380, %v387
    %vm391 = vcmask 1048320
    %392 = vst.msk [vmem:[#allocation8] sm:$0xff] %vm391, %v389
    %393 = vst.msk [vmem:[#allocation8 + $0x8] sm:$0xff] %vm391, %v390
    // Predicated region
    $region34: #{tpu_custom_call.1} parent=1 // pred_check
      _
    $region35: #{tpu_custom_call.1} parent=1 // pred_check_branch
      %395 = sbr.rel (0) target = $region37
    $region36: #{tpu_custom_call.1} parent=1 // pred_region
      %s397 = ssub.s32 256, 256
      %398 = vsyncadd [#allocation4], %s397
      %s399 = sshll.u32 [#allocation8], 4
      %s400 = int_to_ptr.vmem [resolvable:$true] %s399
      %405 = dma.vmem_to_hbm [thread:$0]  %s400, 256, %s5, [#allocation4], 128, 128, 8
    $region37: #{tpu_custom_call.1} parent=1 // pred_fallthru
      _
    // Predicated region
    $region38: #{tpu_custom_call.1} parent=1 // pred_check
      _
    $region39: #{tpu_custom_call.1} parent=1 // pred_check_branch
      %407 = sbr.rel (0) target = $region41
    $region40: #{tpu_custom_call.1} parent=1 // pred_region
      %408 = dma.done [#allocation4], 256
    $region41: #{tpu_custom_call.1} parent=1 // pred_fallthru
      _
    %409 = vsyncpa [#allocation3], 1
    %410 = vsyncpa [#allocation6], 1
    %411 = vsyncpa [#allocation4], 1

</llo_original>
